<compile_context>
chip_gen: v6e
topology: v6e:2x2x1
jax: 0.10.0
libtpu: 0.0.40
codegen_flags: <defaults>
</compile_context>

<pallas_src>
import numpy as np
import jax
import jax.numpy as jnp
from jax.experimental import pallas as pl
from jax.experimental.pallas import tpu as pltpu

LANES = 512    # lane-dense last dim (multiple of 128)
MAX_TM = 2048  # max row tile (sublane dim); (2048, 512) f32 = 4 MiB per buffer


def _round_up(a, b):
    return (a + b - 1) // b * b


def _sublane_multiple(dtype):
    """Native sublane packing for the dtype (f32: 8, bf16: 16, 8-bit: 32)."""
    itemsize = jnp.dtype(dtype).itemsize
    return max(8, 32 // max(itemsize, 1))


def requ_kernel(x_ref, o_ref):
    """Elementwise 0.5 * relu(x)^2 on a lane-dense (tm, LANES) tile."""
    x = x_ref[...]
    r = jnp.maximum(x, jnp.zeros((), x.dtype))
    o_ref[...] = jnp.asarray(0.5, x.dtype) * r * r


def requ(x, *, lanes=LANES, max_tm=MAX_TM):
    """ReQU over an arbitrarily-shaped array. Matches 0.5 * relu(x)**2."""
    orig_shape = x.shape
    orig_dtype = x.dtype
    n = x.size
    sub = _sublane_multiple(orig_dtype)

    # Flatten to a lane-dense 2D slab (M, lanes), padding as needed.
    n_pad = _round_up(max(n, 1), lanes)
    m = n_pad // lanes
    # Row tile: big when possible; for small inputs use a single grid step
    # whose row count is rounded to the dtype's native sublane multiple.
    tm = max_tm if m >= max_tm else _round_up(m, sub)
    m_pad = _round_up(m, tm)
    total = m_pad * lanes

    x_flat = jnp.ravel(x)
    if total != n:
        x_flat = jnp.pad(x_flat, (0, total - n))
    x2d = x_flat.reshape(m_pad, lanes)

    out2d = pl.pallas_call(
        requ_kernel,
        out_shape=jax.ShapeDtypeStruct((m_pad, lanes), orig_dtype),
        grid=(m_pad // tm,),
        in_specs=[pl.BlockSpec((tm, lanes), lambda i: (i, 0))],
        out_specs=pl.BlockSpec((tm, lanes), lambda i: (i, 0)),
        compiler_params=pltpu.CompilerParams(
            dimension_semantics=("parallel",)),
    )(x2d)

    out_flat = out2d.reshape(-1)
    if total != n:
        out_flat = out_flat[:n]
    return out_flat.reshape(orig_shape)


def requ_ref(x):
    """Pure-JAX reference mirroring the PyTorch forward exactly."""
    return 0.5 * jnp.maximum(x, 0) ** 2


if __name__ == "__main__":
    key = jax.random.PRNGKey(0)
    # Small shape consistent with a generic activation module input.
    x = jax.random.normal(key, (2, 4, 16, 16), dtype=jnp.float32)

    out = jax.block_until_ready(requ(x))
    ref = requ_ref(x)

    assert out.shape == x.shape and out.dtype == x.dtype
    np.testing.assert_allclose(np.asarray(out), np.asarray(ref),
                               rtol=1e-6, atol=1e-6)
    print("KERNEL_OK")
</pallas_src>

<mosaic_0001>
module attributes {stable_mosaic.version = 11 : i64} {
  func.func @requ_kernel(%arg0: i32, %arg1: memref<8x512xf32, #tpu.memory_space<vmem>>, %arg2: memref<8x512xf32, #tpu.memory_space<vmem>>) attributes {dimension_semantics = [#tpu.dimension_semantics<parallel>], iteration_bounds = array<i64: 1>, scalar_prefetch = 0 : i64, scratch_operands = 0 : i64, tpu.core_type = #tpu.core_type<tc>, window_params = [{transform_indices = @transform_0, window_bounds = array<i64: 8, 512>}, {transform_indices = @transform_1, window_bounds = array<i64: 8, 512>}]} {
    %c0 = arith.constant 0 : index
    %c0_0 = arith.constant 0 : index
    %0 = vector.load %arg1[%c0, %c0_0] : memref<8x512xf32, #tpu.memory_space<vmem>>, vector<8x512xf32>
    %cst = arith.constant 0.000000e+00 : f32
    %1 = vector.broadcast %cst : f32 to vector<8x512xf32>
    %2 = arith.maximumf %0, %1 : vector<8x512xf32>
    %cst_1 = arith.constant 5.000000e-01 : f32
    %3 = vector.broadcast %cst_1 : f32 to vector<8x512xf32>
    %4 = arith.mulf %3, %2 : vector<8x512xf32>
    %5 = arith.mulf %4, %2 : vector<8x512xf32>
    %c0_2 = arith.constant 0 : index
    %c0_3 = arith.constant 0 : index
    %6 = vector.load %arg2[%c0_2, %c0_3] : memref<8x512xf32, #tpu.memory_space<vmem>>, vector<8x512xf32>
    tpu.vector_store %arg2[%c0_2, %c0_3], %5 {strides = array<i32>} : memref<8x512xf32, #tpu.memory_space<vmem>>, vector<8x512xf32>,
    return
  }
  func.func @transform_0(%arg0: i32) -> (i32, i32) {
    %c0_i32 = arith.constant 0 : i32
    %c0_i32_0 = arith.constant 0 : i32
    return %arg0, %c0_i32 : i32, i32
  }
  func.func @transform_1(%arg0: i32) -> (i32, i32) {
    %c0_i32 = arith.constant 0 : i32
    %c0_i32_0 = arith.constant 0 : i32
    return %arg0, %c0_i32 : i32, i32
  }
}

</mosaic_0001>

<llo_original>
// kernel: tpu_custom_call.1
$region0: #{tpu_custom_call.1}
  #allocation0 [shape = 'u32[]', space=smem, size = 0x4, offset = 0x4, fixed_abs, tag = 'smem constant byte address 0x4 - core index']
  #allocation1 [shape = 'u32[144,128]{1,0:T(1,128)}', space=vmem, size = 0x12000, scoped, tag = 'internal scratch']
  %s0 = inlined_call_operand.hbm [shape: f32[8,512], index: 0, kind: input, shape index: {}]
  %s1 = inlined_call_operand.hbm [shape: f32[8,512], index: 1, kind: output, shape index: {}]
  %s2 = sld [smem:[#allocation0]]
  $region18: #{tpu_custom_call.1} parent=0
    _
  %s4 = ssub.s32 1, %s2
  %s5 = scalar_select 0, %s4, %s2
  $region1: #{tpu_custom_call.1} parent=0
    #allocation2 [shape = 'u8[16384]{0}', space=vmem, size = 0x4000, scoped, tag = 'input window, operand 0, single buffered']
    #allocation3 [shape = 's32[1]{0}', space=sflag, size = 0x4, scoped, tag = 'scoped memory for tpu_custom_call.1']
    #allocation4 [shape = 's32[1]{0}', space=sflag, size = 0x4, scoped, tag = 'scoped memory for tpu_custom_call.1']
    #allocation5 [shape = 'u8[16384]{0}', space=vmem, size = 0x4000, scoped, tag = 'output window, operand 0, single buffered']
    %6 = vsyncpa [#allocation3], 0
    %7 = vsyncpa [#allocation4], 0
    // Predicated region
    $region2: #{tpu_custom_call.1} parent=1 // pred_check
      _
    $region3: #{tpu_custom_call.1} parent=1 // pred_check_branch
      %9 = sbr.rel (0) target = $region5
    $region4: #{tpu_custom_call.1} parent=1 // pred_region
      %s11 = ssub.s32 512, 512
      %12 = vsyncadd [#allocation3], %s11
      %s14 = sshll.u32 [#allocation2], 4
      %s15 = int_to_ptr.vmem [resolvable:$true] %s14
      %17 = dma.hbm_to_vmem [thread:$0]  %s0, 512, %s15, [#allocation3]
    $region5: #{tpu_custom_call.1} parent=1 // pred_fallthru
      _
    // Predicated region
    $region6: #{tpu_custom_call.1} parent=1 // pred_check
      _
    $region7: #{tpu_custom_call.1} parent=1 // pred_check_branch
      %19 = sbr.rel (0) target = $region9
    $region8: #{tpu_custom_call.1} parent=1 // pred_region
      %20 = dma.done [#allocation3], 512
    $region9: #{tpu_custom_call.1} parent=1 // pred_fallthru
      _
    %v21 = vld [vmem:[#allocation2] sm:$0xff]
    %v22 = vld [vmem:[#allocation2 + $0x8] sm:$0xff]
    %v23 = vld [vmem:[#allocation2 + $0x10] sm:$0xff]
    %v24 = vld [vmem:[#allocation2 + $0x18] sm:$0xff]
    %v25 = vmax.f32 %v21, 0.0
    %v26 = vmax.f32 %v22, 0.0
    %v27 = vmax.f32 %v23, 0.0
    %v28 = vmax.f32 %v24, 0.0
    %v29 = vmul.f32 %v25, 0.5
    %v30 = vmul.f32 %v26, 0.5
    %v31 = vmul.f32 %v27, 0.5
    %v32 = vmul.f32 %v28, 0.5
    %v33 = vmul.f32 %v29, %v25
    %v34 = vmul.f32 %v30, %v26
    %v35 = vmul.f32 %v31, %v27
    %v36 = vmul.f32 %v32, %v28
    %37 = vst [vmem:[#allocation5] sm:$0xff] %v33
    %38 = vst [vmem:[#allocation5 + $0x8] sm:$0xff] %v34
    %39 = vst [vmem:[#allocation5 + $0x10] sm:$0xff] %v35
    %40 = vst [vmem:[#allocation5 + $0x18] sm:$0xff] %v36
    // Predicated region
    $region10: #{tpu_custom_call.1} parent=1 // pred_check
      _
    $region11: #{tpu_custom_call.1} parent=1 // pred_check_branch
      %42 = sbr.rel (0) target = $region13
    $region12: #{tpu_custom_call.1} parent=1 // pred_region
      %s44 = ssub.s32 512, 512
      %45 = vsyncadd [#allocation4], %s44
      %s47 = sshll.u32 [#allocation5], 4
      %s48 = int_to_ptr.vmem [resolvable:$true] %s47
      %50 = dma.vmem_to_hbm [thread:$0]  %s48, 512, %s1, [#allocation4]
    $region13: #{tpu_custom_call.1} parent=1 // pred_fallthru
      _
    // Predicated region
    $region14: #{tpu_custom_call.1} parent=1 // pred_check
      _
    $region15: #{tpu_custom_call.1} parent=1 // pred_check_branch
      %52 = sbr.rel (0) target = $region17
    $region16: #{tpu_custom_call.1} parent=1 // pred_region
      %53 = dma.done [#allocation4], 512
    $region17: #{tpu_custom_call.1} parent=1 // pred_fallthru
      _
    %54 = vsyncpa [#allocation3], 1
    %55 = vsyncpa [#allocation4], 1

</llo_original>
